<compile_context>
chip_gen: v7x
topology: tpu7x:2x2x1
jax: 0.10.0
libtpu: 0.0.40
codegen_flags: <defaults>
</compile_context>

<pallas_src>
import jax
import jax.numpy as jnp
from jax.experimental import pallas as pl
from jax.experimental.pallas import tpu as pltpu


def _round_up(x, m):
    return ((x + m - 1) // m) * m


def _reweighted_ce_kernel(logits_ref, targets_ref, weights_ref, out_ref):
    # logits_ref : (TB, C)     native dtype (bf16/f32), one batch tile
    # targets_ref: (B_pad, 1)  i32, resident whole array
    # weights_ref: (B_pad, 1)  f32, resident whole array (0 on padded rows)
    # out_ref    : (1, 1)      f32, resident accumulator (weighted SUM)
    i = pl.program_id(0)
    tb, c = logits_ref.shape

    @pl.when(i == 0)
    def _():
        out_ref[...] = jnp.zeros_like(out_ref)

    # bf16 on the wire -> f32 in vregs (free VPU cast under the DMA)
    logits = logits_ref[...].astype(jnp.float32)                      # (TB, C)

    # slice this tile's rows out of the resident per-sample tensors
    start = pl.multiple_of(i * tb, tb)
    targets = targets_ref[pl.ds(start, tb), :]                        # (TB, 1) i32
    w = weights_ref[pl.ds(start, tb), :].astype(jnp.float32)          # (TB, 1) f32

    # numerically stable log-sum-exp over the class (lane) axis
    m = jnp.max(logits, axis=-1, keepdims=True)                       # (TB, 1)
    lse = m + jnp.log(jnp.sum(jnp.exp(logits - m), axis=-1, keepdims=True))

    # target-logit gather without a materialized one-hot temporary
    class_ids = jax.lax.broadcasted_iota(jnp.int32, (tb, c), 1)       # (TB, C)
    tgt_logit = jnp.sum(jnp.where(class_ids == targets, logits, 0.0),
                        axis=-1, keepdims=True)                       # (TB, 1)

    per_sample = lse - tgt_logit                                      # (TB, 1)
    out_ref[...] += jnp.sum(w * per_sample, axis=0, keepdims=True)    # (1, 1)


@jax.jit
def reweighted_loss(logits, targets, environments, env_weight_table):
    """Pallas-backed ReweightedLossFunction.forward (CrossEntropy, 'none')."""
    b, c = logits.shape

    # glue: environment-index -> weight lookup (the module's dict lookup)
    per_sample_w = jnp.take(env_weight_table, environments).astype(jnp.float32)
    targets_i32 = targets.astype(jnp.int32)

    # batch tile: big tiles amortize per-step overhead; multiple of 16 sublanes
    # (covers bf16 packing). 512 rows keeps 2x double-buffered bf16 blocks well
    # under VMEM even for large C on v7x (64 MiB).
    tb = min(512, _round_up(b, 16))
    b_pad = _round_up(b, tb)
    if b_pad != b:
        pad = b_pad - b
        logits = jnp.pad(logits, ((0, pad), (0, 0)))
        targets_i32 = jnp.pad(targets_i32, (0, pad))
        per_sample_w = jnp.pad(per_sample_w, (0, pad))  # weight 0 masks padded rows
    num_blocks = b_pad // tb

    targets_2d = targets_i32.reshape(b_pad, 1)
    weights_2d = per_sample_w.reshape(b_pad, 1)

    itemsize = jnp.dtype(logits.dtype).itemsize
    cost = pl.CostEstimate(
        flops=5 * b_pad * c,
        transcendentals=b_pad * c,
        bytes_accessed=b_pad * c * itemsize + b_pad * 8 + 4,
    )

    weighted_sum = pl.pallas_call(
        _reweighted_ce_kernel,
        out_shape=jax.ShapeDtypeStruct((1, 1), jnp.float32),
        grid_spec=pltpu.PrefetchScalarGridSpec(
            num_scalar_prefetch=0,
            grid=(num_blocks,),
            in_specs=[
                # pipelined batch tiles of the logits (native dtype on the wire)
                pl.BlockSpec((tb, c), lambda i: (i, 0)),
                # tiny per-sample tensors: resident across the whole grid
                pl.BlockSpec((b_pad, 1), lambda i: (0, 0)),
                pl.BlockSpec((b_pad, 1), lambda i: (0, 0)),
            ],
            out_specs=pl.BlockSpec((1, 1), lambda i: (0, 0)),
        ),
        compiler_params=pltpu.CompilerParams(
            dimension_semantics=("arbitrary",)),
        cost_estimate=cost,
    )(logits, targets_2d, weights_2d)

    # mean over the ORIGINAL batch size (padded rows carry weight 0)
    return weighted_sum[0, 0] / jnp.float32(b)


if __name__ == "__main__":
    key = jax.random.PRNGKey(0)
    k_logits, k_targets, k_envs = jax.random.split(key, 3)

    B, C = 8, 32          # batch, num classes
    NUM_ENVS = 3

    # Deterministic "dataset environment lengths" -> weight table
    # (mirrors: weights[env] = len(env) / mean(len(env) for env in environments))
    env_lengths = jnp.array([10.0, 20.0, 30.0], dtype=jnp.float32)
    env_weight_table = env_lengths / jnp.mean(env_lengths)            # (NUM_ENVS,)

    # bf16 on the wire (the kernel upcasts to f32 in-VMEM)
    logits = jax.random.normal(k_logits, (B, C), dtype=jnp.float32).astype(jnp.bfloat16)
    targets = jax.random.randint(k_targets, (B,), 0, C, dtype=jnp.int32)
    environments = jax.random.randint(k_envs, (B,), 0, NUM_ENVS, dtype=jnp.int32)

    loss = reweighted_loss(logits, targets, environments, env_weight_table)
    jax.block_until_ready(loss)

    # pure-JAX reference sanity check (f32 math on the same bf16 values)
    lg = logits.astype(jnp.float32)
    logp = jax.nn.log_softmax(lg, axis=-1)
    ce = -jnp.take_along_axis(logp, targets[:, None], axis=-1)[:, 0]
    ref = jnp.mean(jnp.take(env_weight_table, environments) * ce)
    assert jnp.allclose(loss, ref, rtol=2e-5, atol=2e-5), (loss, ref)

    print("KERNEL_OK")
</pallas_src>

<mosaic_0001>
module attributes {stable_mosaic.version = 11 : i64} {
  func.func @_reweighted_ce_kernel(%arg0: i32, %arg1: memref<16x32xbf16, #tpu.memory_space<vmem>>, %arg2: memref<16x1xi32, #tpu.memory_space<vmem>>, %arg3: memref<16x1xf32, #tpu.memory_space<vmem>>, %arg4: memref<1x1xf32, #tpu.memory_space<vmem>>) attributes {dimension_semantics = [#tpu.dimension_semantics<arbitrary>], iteration_bounds = array<i64: 1>, scalar_prefetch = 0 : i64, scratch_operands = 0 : i64, tpu.core_type = #tpu.core_type<tc>, window_params = [{transform_indices = @transform_0, window_bounds = array<i64: 16, 32>}, {pipeline_mode = #tpu.pipeline_mode<synchronous>, transform_indices = @transform_1, window_bounds = array<i64: 16, 1>}, {pipeline_mode = #tpu.pipeline_mode<synchronous>, transform_indices = @transform_2, window_bounds = array<i64: 16, 1>}, {pipeline_mode = #tpu.pipeline_mode<synchronous>, transform_indices = @transform_3, window_bounds = array<i64: 1, 1>}]} {
    %c0_i32 = arith.constant 0 : i32
    %0 = arith.cmpi eq, %arg0, %c0_i32 : i32
    %1 = arith.extui %0 : i1 to i32
    %c0_i32_0 = arith.constant 0 : i32
    %2 = arith.cmpi ne, %1, %c0_i32_0 : i32
    scf.if %2 {
      %cst_12 = arith.constant 0.000000e+00 : f32
      %34 = vector.broadcast %cst_12 : f32 to vector<1x1xf32>
      %c0_13 = arith.constant 0 : index
      %c0_14 = arith.constant 0 : index
      %35 = vector.load %arg4[%c0_13, %c0_14] : memref<1x1xf32, #tpu.memory_space<vmem>>, vector<1x1xf32>
      tpu.vector_store %arg4[%c0_13, %c0_14], %34 {strides = array<i32>} : memref<1x1xf32, #tpu.memory_space<vmem>>, vector<1x1xf32>,
    } else {
    }
    %c0 = arith.constant 0 : index
    %c0_1 = arith.constant 0 : index
    %3 = vector.load %arg1[%c0, %c0_1] : memref<16x32xbf16, #tpu.memory_space<vmem>>, vector<16x32xbf16>
    %4 = arith.extf %3 : vector<16x32xbf16> to vector<16x32xf32>
    %c16_i32 = arith.constant 16 : i32
    %5 = arith.muli %arg0, %c16_i32 : i32
    %6 = tpu.assume_multiple %5, 16 : i32
    %7 = arith.index_cast %6 : i32 to index
    %c0_2 = arith.constant 0 : index
    %8 = vector.load %arg2[%7, %c0_2] : memref<16x1xi32, #tpu.memory_space<vmem>>, vector<16x1xi32>
    %9 = arith.index_cast %6 : i32 to index
    %c0_3 = arith.constant 0 : index
    %10 = vector.load %arg3[%9, %c0_3] : memref<16x1xf32, #tpu.memory_space<vmem>>, vector<16x1xf32>
    %cst = arith.constant dense<0xFF800000> : vector<16xf32>
    %11 = vector.multi_reduction <maximumf>, %4, %cst [1] : vector<16x32xf32> to vector<16xf32>
    %12 = vector.shape_cast %11 : vector<16xf32> to vector<16x1xf32>
    %13 = vector.broadcast %12 : vector<16x1xf32> to vector<16x32xf32>
    %14 = arith.subf %4, %13 : vector<16x32xf32>
    %15 = math.exp %14 : vector<16x32xf32>
    %cst_4 = arith.constant dense<0.000000e+00> : vector<16xf32>
    %16 = vector.multi_reduction <add>, %15, %cst_4 [1] : vector<16x32xf32> to vector<16xf32>
    %17 = vector.shape_cast %16 : vector<16xf32> to vector<16x1xf32>
    %18 = math.log %17 : vector<16x1xf32>
    %19 = arith.addf %12, %18 : vector<16x1xf32>
    %20 = tpu.iota {dimensions = array<i32: 1>} : vector<16x32xi32>
    %21 = vector.broadcast %8 : vector<16x1xi32> to vector<16x32xi32>
    %22 = arith.cmpi eq, %20, %21 : vector<16x32xi32>
    %cst_5 = arith.constant 0.000000e+00 : f32
    %23 = vector.broadcast %cst_5 : f32 to vector<16x32xf32>
    %24 = arith.select %22, %4, %23 : vector<16x32xi1>, vector<16x32xf32>
    %cst_6 = arith.constant dense<0.000000e+00> : vector<16xf32>
    %25 = vector.multi_reduction <add>, %24, %cst_6 [1] : vector<16x32xf32> to vector<16xf32>
    %26 = vector.shape_cast %25 : vector<16xf32> to vector<16x1xf32>
    %27 = arith.subf %19, %26 : vector<16x1xf32>
    %c0_7 = arith.constant 0 : index
    %c0_8 = arith.constant 0 : index
    %28 = vector.load %arg4[%c0_7, %c0_8] : memref<1x1xf32, #tpu.memory_space<vmem>>, vector<1x1xf32>
    %29 = arith.mulf %10, %27 : vector<16x1xf32>
    %cst_9 = arith.constant dense<0.000000e+00> : vector<1xf32>
    %30 = vector.multi_reduction <add>, %29, %cst_9 [0] : vector<16x1xf32> to vector<1xf32>
    %31 = vector.shape_cast %30 : vector<1xf32> to vector<1x1xf32>
    %32 = arith.addf %28, %31 : vector<1x1xf32>
    %c0_10 = arith.constant 0 : index
    %c0_11 = arith.constant 0 : index
    %33 = vector.load %arg4[%c0_10, %c0_11] : memref<1x1xf32, #tpu.memory_space<vmem>>, vector<1x1xf32>
    tpu.vector_store %arg4[%c0_10, %c0_11], %32 {strides = array<i32>} : memref<1x1xf32, #tpu.memory_space<vmem>>, vector<1x1xf32>,
    return
  }
  func.func @transform_0(%arg0: i32) -> (i32, i32) {
    %c0_i32 = arith.constant 0 : i32
    %c0_i32_0 = arith.constant 0 : i32
    return %arg0, %c0_i32 : i32, i32
  }
  func.func @transform_1(%arg0: i32) -> (i32, i32) {
    %c0_i32 = arith.constant 0 : i32
    %c0_i32_0 = arith.constant 0 : i32
    %c0_i32_1 = arith.constant 0 : i32
    return %c0_i32, %c0_i32_0 : i32, i32
  }
  func.func @transform_2(%arg0: i32) -> (i32, i32) {
    %c0_i32 = arith.constant 0 : i32
    %c0_i32_0 = arith.constant 0 : i32
    %c0_i32_1 = arith.constant 0 : i32
    return %c0_i32, %c0_i32_0 : i32, i32
  }
  func.func @transform_3(%arg0: i32) -> (i32, i32) {
    %c0_i32 = arith.constant 0 : i32
    %c0_i32_0 = arith.constant 0 : i32
    %c0_i32_1 = arith.constant 0 : i32
    return %c0_i32, %c0_i32_0 : i32, i32
  }
}

</mosaic_0001>

<llo_original>
// kernel: reweighted_loss.1
$region0: #{reweighted_loss.1}
  #allocation0 [shape = 'u32[]', space=smem, size = 0x4, offset = 0x4, fixed_abs, tag = 'smem constant byte address 0x4 - core index']
  #allocation1 [shape = 'u32[144,128]{1,0:T(1,128)}', space=vmem, size = 0x12000, scoped, tag = 'internal scratch']
  %s0 = inlined_call_operand.vmem [shape: bf16[16,32], index: 0, kind: input, shape index: {}]
  %s1 = inlined_call_operand.vmem [shape: s32[16,1], index: 1, kind: input, shape index: {}]
  %s2 = inlined_call_operand.vmem [shape: f32[16,1], index: 2, kind: input, shape index: {}]
  %s3 = inlined_call_operand.hbm [shape: f32[1,1], index: 3, kind: output, shape index: {}]
  %s4 = sld [smem:[#allocation0]]
  $region26: #{reweighted_loss.1} parent=0
    _
  %s6 = ssub.s32 1, %s4
  %s7 = scalar_select 0, %s6, %s4
  $region1: #{reweighted_loss.1} parent=0
    #allocation2 [shape = 'u8[512]{0}', space=vmem, size = 0x400, scoped, tag = 'output window, operand 0, single buffered']
    #allocation3 [shape = 's32[1]{0}', space=sflag, size = 0x4, scoped, tag = 'scoped memory for reweighted_loss.1']
    %8 = vsyncpa [#allocation3], 0
    // Predicated region
    $region2: #{reweighted_loss.1} parent=1 // pred_check
      _
    $region3: #{reweighted_loss.1} parent=1 // pred_check_branch
      %10 = sbr.rel (0) target = $region5
    $region4: #{reweighted_loss.1} parent=1 // pred_region
      _
    $region5: #{reweighted_loss.1} parent=1 // pred_fallthru
      _
    // Predicated region
    $region6: #{reweighted_loss.1} parent=1 // pred_check
      _
    $region7: #{reweighted_loss.1} parent=1 // pred_check_branch
      %12 = sbr.rel (0) target = $region9
    $region8: #{reweighted_loss.1} parent=1 // pred_region
      _
    $region9: #{reweighted_loss.1} parent=1 // pred_fallthru
      _
    // Predicated region
    $region10: #{reweighted_loss.1} parent=1 // pred_check
      _
    $region11: #{reweighted_loss.1} parent=1 // pred_check_branch
      %14 = sbr.rel (0) target = $region13
    $region12: #{reweighted_loss.1} parent=1 // pred_region
      _
    $region13: #{reweighted_loss.1} parent=1 // pred_fallthru
      _
    %p15 = scmp.eq.s32.totalorder 0, 0
    // Predicated region
    $region14: #{reweighted_loss.1} parent=1 // pred_check
      %p16 = pneg %p15
    $region15: #{reweighted_loss.1} parent=1 // pred_check_branch
      %18 = sbr.rel (%p16) target = $region17
    $region16: #{reweighted_loss.1} parent=1 // pred_region
      %vm19 = vcmask 0
      %20 = vst.msk [vmem:[#allocation2] sm:$0x1] %vm19, 0.0
    $region17: #{reweighted_loss.1} parent=1 // pred_fallthru
      _
    %v21 = vld [vmem:[%s0] sm:$0xf]
    %v22 = vld [vmem:[%s0 + $0x4] sm:$0xf]
    %v23 = vunpack.c.l.bf16 %v21
    %v24 = vunpack.c.l.bf16 %v22
    %s25 = smul.u32 0, 16
    %s26 = scalar_lea.vmem %s1, %s25
    %v27 = vld [vmem:[%s26] sm:$0xff]
    %v28 = vld [vmem:[%s26 + $0x8] sm:$0xff]
    %s29 = scalar_lea.vmem %s2, %s25
    %v30 = vld [vmem:[%s29] sm:$0xff]
    %v31 = vld [vmem:[%s29 + $0x8] sm:$0xff]
    %vm32 = vcmask 261120
    %v33 = vsel %vm32, %v23, -inf
    %34 = vmax.xlane.f32.xlu0 %v33
    %v35 = vpop.xlane.xlu0 %34
    %v36 = vsel %vm32, %v24, -inf
    %37 = vmax.xlane.f32.xlu0 %v36
    %v38 = vpop.xlane.xlu0 %37
    %v39 = vsub.f32 %v23, %v35
    %v40 = vsub.f32 %v24, %v38
    %v41 = vmul.f32 %v39, 1.442695
    %v42 = vpow.pop %v41
    %v43 = vmul.f32 %v40, 1.442695
    %v44 = vpow.pop %v43
    %v45 = vsel %vm32, %v42, 0.0
    %46 = vadd.xlane.f32.xlu0 %v45
    %v47 = vpop.xlane.xlu0 %46
    %v48 = vsel %vm32, %v44, 0.0
    %49 = vadd.xlane.f32.xlu0 %v48
    %v50 = vpop.xlane.xlu0 %49
    %v51 = vlog2.pop %v47
    %v52 = vmul.f32 %v51, 0.6931472
    %v53 = vlog2.pop %v50
    %v54 = vmul.f32 %v53, 0.6931472
    %v55 = vadd.f32 %v35, %v52
    %v56 = vadd.f32 %v38, %v54
    %v57 = vlaneseq
    %v58 = vand.u32 %v57, 127
    %59 = vset.pattern.permute.xlu0 0
    %60 = vperm.xlu0 %59, %v27
    %v61 = vpop.permute.xlu0 %60
    %62 = vset.pattern.permute.xlu0 0
    %63 = vperm.xlu0 %62, %v28
    %v64 = vpop.permute.xlu0 %63
    %vm65 = vcmp.eq.s32.totalorder %v58, %v61
    %vm66 = vcmp.eq.s32.totalorder %v58, %v64
    %v67 = vsel %vm65, %v23, 0.0
    %v68 = vsel %vm66, %v24, 0.0
    %v69 = vsel %vm32, %v67, 0.0
    %70 = vadd.xlane.f32.xlu0 %v69
    %v71 = vpop.xlane.xlu0 %70
    %v72 = vsel %vm32, %v68, 0.0
    %73 = vadd.xlane.f32.xlu0 %v72
    %v74 = vpop.xlane.xlu0 %73
    %v75 = vsub.f32 %v55, %v71
    %v76 = vsub.f32 %v56, %v74
    %v77 = vld [vmem:[#allocation2] sm:$0x1]
    %v78 = vmul.f32 %v30, %v75
    %v79 = vmul.f32 %v31, %v76
    %vm80 = vcmask 7168
    %v81 = vsel %vm80, %v78, 0.0
    %v82 = vsel %vm80, %v79, 0.0
    %v83 = vadd.f32 %v81, %v82
    %v84 = vrot.slane %v83, 4
    %v85 = vadd.f32 %v83, %v84
    %v86 = vrot.slane %v85, 2
    %v87 = vadd.f32 %v85, %v86
    %v88 = vrot.slane %v87, 1
    %v89 = vadd.f32 %v87, %v88
    %v90 = vadd.f32 %v77, %v89
    %vm91 = vcmask 0
    %92 = vst.msk [vmem:[#allocation2] sm:$0x1] %vm91, %v90
    // Predicated region
    $region18: #{reweighted_loss.1} parent=1 // pred_check
      _
    $region19: #{reweighted_loss.1} parent=1 // pred_check_branch
      %94 = sbr.rel (0) target = $region21
    $region20: #{reweighted_loss.1} parent=1 // pred_region
      %s96 = ssub.s32 16, 16
      %97 = vsyncadd [#allocation3], %s96
      %s99 = sshll.u32 [#allocation2], 4
      %s100 = int_to_ptr.vmem [resolvable:$true] %s99
      %102 = dma.vmem_to_hbm [thread:$0]  %s100, 16, %s3, [#allocation3]
    $region21: #{reweighted_loss.1} parent=1 // pred_fallthru
      _
    // Predicated region
    $region22: #{reweighted_loss.1} parent=1 // pred_check
      _
    $region23: #{reweighted_loss.1} parent=1 // pred_check_branch
      %104 = sbr.rel (0) target = $region25
    $region24: #{reweighted_loss.1} parent=1 // pred_region
      %105 = dma.done [#allocation3], 16
    $region25: #{reweighted_loss.1} parent=1 // pred_fallthru
      _
    %106 = vsyncpa [#allocation3], 1

</llo_original>
